<compile_context>
chip_gen: v6e
topology: v6e:2x2x1
jax: 0.10.0
libtpu: 0.0.40
codegen_flags: <defaults>
</compile_context>

<pallas_src>
import jax
import jax.numpy as jnp
import numpy as np
from jax.experimental import pallas as pl
from jax.experimental.pallas import tpu as pltpu


def _round_up(x, m):
    return ((x + m - 1) // m) * m


def _pick_lane_tile(total_pad128, max_tile):
    """Largest multiple of 128 that divides total_pad128 and is <= max_tile."""
    best = 128
    t = 128
    while t <= min(max_tile, total_pad128):
        if total_pad128 % t == 0:
            best = t
        t += 128
    return best


def conv_proj_kernel(x_ref, wexp_ref, wproj_ref, b_ref, out_ref):
    # x_ref:     (tile_b, K*R)  flattened sequence embeddings
    # wexp_ref:  (K*R, R)       block-diagonal conv-expansion (VMEM-resident)
    # wproj_ref: (R, tile_h)    llama_proj weight tile
    # b_ref:     (1, tile_h)    fused (conv + proj) bias tile, f32
    # out_ref:   (tile_b, tile_h)
    #
    # Stage 1: Conv2d(1, 1, (K, 1)) as an MXU matmul:
    #   conv[b, r] = sum_k x[b, k*R + r] * w_conv[k]
    conv = jnp.dot(x_ref[...], wexp_ref[...], preferred_element_type=jnp.float32)
    # Stage 2: llama_proj; bias already folds the conv bias exactly.
    out_ref[...] = (
        jnp.dot(conv.astype(wproj_ref.dtype), wproj_ref[...],
                preferred_element_type=jnp.float32)
        + b_ref[...]
    ).astype(out_ref.dtype)


def prepare_encode_seq_params(conv_weight, conv_bias, proj_weight, proj_bias,
                              *, param_dtype=jnp.float32):
    """One-time (parameter-load-time) preprocessing of RecInt params.

    conv_weight: (1, 1, K, 1)  -- nn.Conv2d(1, 1, (10, 1)).weight (PyTorch layout)
    conv_bias:   (1,)          -- nn.Conv2d(...).bias
    proj_weight: (H, R)        -- nn.Linear(rec_size, hidden).weight (PyTorch layout)
    proj_bias:   (H,)          -- nn.Linear(...).bias
    """
    conv_weight = jnp.asarray(conv_weight, jnp.float32)
    K = conv_weight.shape[-2]
    w_conv = conv_weight.reshape(K)                         # (K,), k order matches x
    b_conv = jnp.asarray(conv_bias, jnp.float32).reshape(())
    w_proj = jnp.asarray(proj_weight, jnp.float32).T        # (R, H)
    b_proj = jnp.asarray(proj_bias, jnp.float32).reshape(-1)
    R, H = w_proj.shape

    # Block-diagonal conv expansion: W_expand[k*R + r, r] = w_conv[k].
    w_expand = (w_conv[:, None, None] * jnp.eye(R, dtype=jnp.float32)).reshape(K * R, R)

    # The conv bias is one scalar added to every conv[b, r]; fold it exactly
    # into the projection bias:
    #   out = (x @ Wexp + b_conv) @ w_proj + b_proj
    #       =  x @ Wexp @ w_proj + (b_conv * sum_r w_proj[r, :] + b_proj)
    b_fused = (b_conv * jnp.sum(w_proj, axis=0) + b_proj).reshape(1, H)

    return dict(
        w_expand=w_expand.astype(param_dtype),
        w_proj=w_proj.astype(param_dtype),
        b_fused=b_fused,                # bias kept f32 (added after f32-accum dot)
        K=int(K), R=int(R), H=int(H),
        param_dtype=param_dtype,
    )


def encode_seq_pallas(seq_emb_all, params, *, tile_b=128, tile_h=2048):
    """Pallas implementation of RecInt.encode_seq's compute path.

    seq_emb_all: (B, K, R) float32 -- output of rec_model.cacul_h_all(seq, len_seq).
    Returns (seq_input_llama (B, 1, H) f32, seq_atts_llama (B, 1) int32).
    """
    B, K, R = seq_emb_all.shape
    assert K == params["K"] and R == params["R"]
    H = params["H"]
    KR = K * R
    param_dtype = params["param_dtype"]

    x_flat = seq_emb_all.reshape(B, KR).astype(param_dtype)

    # ---- B tiling: pad to a multiple of 8 (f32 sublane), clamp tile_b. ----
    b_pad = _round_up(B, 8)
    tile_b = min(tile_b, b_pad)
    b_pad = _round_up(b_pad, tile_b)
    if b_pad != B:
        x_flat = jnp.pad(x_flat, ((0, b_pad - B), (0, 0)))

    # ---- H tiling: pad H to x128, pick a 128-multiple divisor tile <= tile_h. ----
    h_pad = _round_up(H, 128)
    tile_h = _pick_lane_tile(h_pad, tile_h)
    w_proj = params["w_proj"]
    b_fused = params["b_fused"]
    if h_pad != H:
        w_proj = jnp.pad(w_proj, ((0, 0), (0, h_pad - H)))
        b_fused = jnp.pad(b_fused, ((0, 0), (0, h_pad - H)))

    # Grid: H tiles OUTER, B tiles INNER -> w_proj block index (0, j) constant
    # across the inner loop, so the projection weight is never re-streamed per
    # B tile.  Both axes "parallel" so v7x can shard tiles across TensorCores.
    grid = (h_pad // tile_h, b_pad // tile_b)

    out_padded = pl.pallas_call(
        conv_proj_kernel,
        out_shape=jax.ShapeDtypeStruct((b_pad, h_pad), jnp.float32),
        grid=grid,
        in_specs=[
            pl.BlockSpec((tile_b, KR), lambda j, i: (i, 0)),  # activations
            pl.BlockSpec((KR, R), lambda j, i: (0, 0)),       # conv expansion (VMEM-resident)
            pl.BlockSpec((R, tile_h), lambda j, i: (0, j)),   # projection weight
            pl.BlockSpec((1, tile_h), lambda j, i: (0, j)),   # fused bias
        ],
        out_specs=pl.BlockSpec((tile_b, tile_h), lambda j, i: (i, j)),
        compiler_params=pltpu.CompilerParams(
            dimension_semantics=("parallel", "parallel"),
            vmem_limit_bytes=32 * 1024 * 1024,
        ),
    )(x_flat, params["w_expand"], w_proj, b_fused)

    seq_input_llama = out_padded[:B, :H].reshape(B, 1, H)
    seq_atts_llama = jnp.ones((B, 1), dtype=jnp.int32)
    return seq_input_llama, seq_atts_llama


def encode_seq_ref(seq_emb_all, conv_weight, conv_bias, proj_weight, proj_bias):
    """Pure-JAX reference matching PyTorch Conv2d(1,1,(10,1)) + Linear."""
    K = conv_weight.shape[-2]
    w_conv = conv_weight.reshape(K)
    conv = jnp.einsum('bkr,k->br', seq_emb_all, w_conv) + conv_bias.reshape(())
    proj = conv @ proj_weight.T + proj_bias
    return proj.reshape(seq_emb_all.shape[0], 1, -1)


if __name__ == "__main__":
    # Small shapes consistent with the module: batch B=2, conv window K=10
    # (fixed by the Conv2d kernel (10, 1)), rec_size R=64, llama hidden H=128
    # (small stand-in for 4096).
    B, K, R, H = 2, 10, 64, 128

    key = jax.random.PRNGKey(0)
    k_x, k_wc, k_bc, k_wp, k_bp = jax.random.split(key, 5)

    # TODO(synk): rec_model.cacul_h_all (SASRec) is an external torch model;
    # its (B, 10, R) output is synthesized here.
    seq_emb_all = jax.random.normal(k_x, (B, K, R), dtype=jnp.float32)

    # Parameters in their native PyTorch layouts.
    conv_weight = jax.random.normal(k_wc, (1, 1, K, 1), jnp.float32) / np.sqrt(K)
    conv_bias = jax.random.normal(k_bc, (1,), jnp.float32) * 0.1
    proj_weight = jax.random.normal(k_wp, (H, R), jnp.float32) / np.sqrt(R)
    proj_bias = jax.random.normal(k_bp, (H,), jnp.float32) * 0.1

    ref = encode_seq_ref(seq_emb_all, conv_weight, conv_bias, proj_weight, proj_bias)

    # f32-streamed weights: exact match against the PyTorch-equivalent reference.
    params_f32 = prepare_encode_seq_params(
        conv_weight, conv_bias, proj_weight, proj_bias, param_dtype=jnp.float32)
    seq_input_llama, seq_atts_llama = encode_seq_pallas(seq_emb_all, params_f32)
    seq_input_llama = jax.block_until_ready(seq_input_llama)
    seq_atts_llama = jax.block_until_ready(seq_atts_llama)
    np.testing.assert_allclose(np.asarray(seq_input_llama), np.asarray(ref),
                               rtol=1e-4, atol=1e-4)
    assert seq_input_llama.shape == (B, 1, H)
    assert seq_atts_llama.shape == (B, 1)

    # bf16-streamed weights/activations (halves HBM traffic; f32 MXU accumulate).
    params_bf16 = prepare_encode_seq_params(
        conv_weight, conv_bias, proj_weight, proj_bias, param_dtype=jnp.bfloat16)
    out_bf16, _ = encode_seq_pallas(seq_emb_all, params_bf16)
    out_bf16 = jax.block_until_ready(out_bf16)
    np.testing.assert_allclose(np.asarray(out_bf16), np.asarray(ref),
                               rtol=5e-2, atol=5e-2)

    print("KERNEL_OK")
</pallas_src>

<mosaic_0001>
module attributes {stable_mosaic.version = 11 : i64} {
  func.func @conv_proj_kernel(%arg0: i32, %arg1: i32, %arg2: memref<8x640xf32, #tpu.memory_space<vmem>>, %arg3: memref<640x64xf32, #tpu.memory_space<vmem>>, %arg4: memref<64x128xf32, #tpu.memory_space<vmem>>, %arg5: memref<1x128xf32, #tpu.memory_space<vmem>>, %arg6: memref<8x128xf32, #tpu.memory_space<vmem>>) attributes {dimension_semantics = [#tpu.dimension_semantics<parallel>, #tpu.dimension_semantics<parallel>], iteration_bounds = array<i64: 1, 1>, scalar_prefetch = 0 : i64, scratch_operands = 0 : i64, tpu.core_type = #tpu.core_type<tc>, window_params = [{transform_indices = @transform_0, window_bounds = array<i64: 8, 640>}, {pipeline_mode = #tpu.pipeline_mode<synchronous>, transform_indices = @transform_1, window_bounds = array<i64: 640, 64>}, {transform_indices = @transform_2, window_bounds = array<i64: 64, 128>}, {transform_indices = @transform_3, window_bounds = array<i64: 1, 128>}, {transform_indices = @transform_4, window_bounds = array<i64: 8, 128>}]} {
    %c0 = arith.constant 0 : index
    %c0_0 = arith.constant 0 : index
    %0 = vector.load %arg2[%c0, %c0_0] : memref<8x640xf32, #tpu.memory_space<vmem>>, vector<8x640xf32>
    %c0_1 = arith.constant 0 : index
    %c0_2 = arith.constant 0 : index
    %1 = vector.load %arg3[%c0_1, %c0_2] : memref<640x64xf32, #tpu.memory_space<vmem>>, vector<640x64xf32>
    %cst = arith.constant dense<0.000000e+00> : vector<8x64xf32>
    %2 = tpu.matmul %0, %1, %cst {dimension_numbers = #tpu.dot_dimension_numbers<[1], [0], [0], [1], [0, 0, 1, 1], [], []>} : vector<8x640xf32>, vector<640x64xf32>, vector<8x64xf32> -> vector<8x64xf32>
    %c0_3 = arith.constant 0 : index
    %c0_4 = arith.constant 0 : index
    %3 = vector.load %arg4[%c0_3, %c0_4] : memref<64x128xf32, #tpu.memory_space<vmem>>, vector<64x128xf32>
    %cst_5 = arith.constant dense<0.000000e+00> : vector<8x128xf32>
    %4 = tpu.matmul %2, %3, %cst_5 {dimension_numbers = #tpu.dot_dimension_numbers<[1], [0], [0], [1], [0, 0, 1, 1], [], []>} : vector<8x64xf32>, vector<64x128xf32>, vector<8x128xf32> -> vector<8x128xf32>
    %c0_6 = arith.constant 0 : index
    %c0_7 = arith.constant 0 : index
    %5 = vector.load %arg5[%c0_6, %c0_7] : memref<1x128xf32, #tpu.memory_space<vmem>>, vector<1x128xf32>
    %6 = vector.broadcast %5 : vector<1x128xf32> to vector<8x128xf32>
    %7 = arith.addf %4, %6 : vector<8x128xf32>
    %c0_8 = arith.constant 0 : index
    %c0_9 = arith.constant 0 : index
    %8 = vector.load %arg6[%c0_8, %c0_9] : memref<8x128xf32, #tpu.memory_space<vmem>>, vector<8x128xf32>
    tpu.vector_store %arg6[%c0_8, %c0_9], %7 {strides = array<i32>} : memref<8x128xf32, #tpu.memory_space<vmem>>, vector<8x128xf32>,
    return
  }
  func.func @transform_0(%arg0: i32, %arg1: i32) -> (i32, i32) {
    %c0_i32 = arith.constant 0 : i32
    %c0_i32_0 = arith.constant 0 : i32
    return %arg1, %c0_i32 : i32, i32
  }
  func.func @transform_1(%arg0: i32, %arg1: i32) -> (i32, i32) {
    %c0_i32 = arith.constant 0 : i32
    %c0_i32_0 = arith.constant 0 : i32
    %c0_i32_1 = arith.constant 0 : i32
    return %c0_i32, %c0_i32_0 : i32, i32
  }
  func.func @transform_2(%arg0: i32, %arg1: i32) -> (i32, i32) {
    %c0_i32 = arith.constant 0 : i32
    %c0_i32_0 = arith.constant 0 : i32
    return %c0_i32, %arg0 : i32, i32
  }
  func.func @transform_3(%arg0: i32, %arg1: i32) -> (i32, i32) {
    %c0_i32 = arith.constant 0 : i32
    %c0_i32_0 = arith.constant 0 : i32
    return %c0_i32, %arg0 : i32, i32
  }
  func.func @transform_4(%arg0: i32, %arg1: i32) -> (i32, i32) {
    %c0_i32 = arith.constant 0 : i32
    return %arg1, %arg0 : i32, i32
  }
}

</mosaic_0001>

<llo_original>
// kernel: tpu_custom_call.1
$region0: #{tpu_custom_call.1}
  #allocation0 [shape = 'u32[]', space=smem, size = 0x4, offset = 0x4, fixed_abs, tag = 'smem constant byte address 0x4 - core index']
  #allocation1 [shape = 'u32[144,128]{1,0:T(1,128)}', space=vmem, size = 0x12000, scoped, tag = 'internal scratch']
  %s0 = inlined_call_operand.vmem [shape: f32[8,640], index: 0, kind: input, shape index: {}]
  %s1 = inlined_call_operand.vmem [shape: f32[640,64], index: 1, kind: input, shape index: {}]
  %s2 = inlined_call_operand.vmem [shape: f32[64,128], index: 2, kind: input, shape index: {}]
  %s3 = inlined_call_operand.vmem [shape: f32[1,128], index: 3, kind: input, shape index: {}]
  %s4 = inlined_call_operand.hbm [shape: f32[8,128], index: 4, kind: output, shape index: {}]
  %s5 = sld [smem:[#allocation0]]
  $region26: #{tpu_custom_call.1} parent=0
    _
  %s7 = ssub.s32 1, %s5
  %s8 = scalar_select 0, %s7, %s5
  $region1: #{tpu_custom_call.1} parent=0
    #allocation2 [shape = 'u8[4096]{0}', space=vmem, size = 0x1000, scoped, tag = 'output window, operand 0, single buffered']
    #allocation3 [shape = 's32[1]{0}', space=sflag, size = 0x4, scoped, tag = 'scoped memory for tpu_custom_call.1']
    %9 = vsyncpa [#allocation3], 0
    // Predicated region
    $region2: #{tpu_custom_call.1} parent=1 // pred_check
      _
    $region3: #{tpu_custom_call.1} parent=1 // pred_check_branch
      %11 = sbr.rel (0) target = $region5
    $region4: #{tpu_custom_call.1} parent=1 // pred_region
      _
    $region5: #{tpu_custom_call.1} parent=1 // pred_fallthru
      _
    // Predicated region
    $region6: #{tpu_custom_call.1} parent=1 // pred_check
      _
    $region7: #{tpu_custom_call.1} parent=1 // pred_check_branch
      %13 = sbr.rel (0) target = $region9
    $region8: #{tpu_custom_call.1} parent=1 // pred_region
      _
    $region9: #{tpu_custom_call.1} parent=1 // pred_fallthru
      _
    // Predicated region
    $region10: #{tpu_custom_call.1} parent=1 // pred_check
      _
    $region11: #{tpu_custom_call.1} parent=1 // pred_check_branch
      %15 = sbr.rel (0) target = $region13
    $region12: #{tpu_custom_call.1} parent=1 // pred_region
      _
    $region13: #{tpu_custom_call.1} parent=1 // pred_fallthru
      _
    // Predicated region
    $region14: #{tpu_custom_call.1} parent=1 // pred_check
      _
    $region15: #{tpu_custom_call.1} parent=1 // pred_check_branch
      %17 = sbr.rel (0) target = $region17
    $region16: #{tpu_custom_call.1} parent=1 // pred_region
      _
    $region17: #{tpu_custom_call.1} parent=1 // pred_fallthru
      _
    %v18 = vld [vmem:[%s0] sm:$0xff]
    %v19 = vld [vmem:[%s0 + $0x8] sm:$0xff]
    %v20 = vld [vmem:[%s0 + $0x10] sm:$0xff]
    %v21 = vld [vmem:[%s0 + $0x18] sm:$0xff]
    %v22 = vld [vmem:[%s0 + $0x20] sm:$0xff]
    %v23 = vld [vmem:[%s1] sm:$0xff]
    %v24 = vld [vmem:[%s1 + $0x8] sm:$0xff]
    %v25 = vld [vmem:[%s1 + $0x10] sm:$0xff]
    %v26 = vld [vmem:[%s1 + $0x18] sm:$0xff]
    %v27 = vld [vmem:[%s1 + $0x20] sm:$0xff]
    %v28 = vld [vmem:[%s1 + $0x28] sm:$0xff]
    %v29 = vld [vmem:[%s1 + $0x30] sm:$0xff]
    %v30 = vld [vmem:[%s1 + $0x38] sm:$0xff]
    %v31 = vld [vmem:[%s1 + $0x40] sm:$0xff]
    %v32 = vld [vmem:[%s1 + $0x48] sm:$0xff]
    %v33 = vld [vmem:[%s1 + $0x50] sm:$0xff]
    %v34 = vld [vmem:[%s1 + $0x58] sm:$0xff]
    %v35 = vld [vmem:[%s1 + $0x60] sm:$0xff]
    %v36 = vld [vmem:[%s1 + $0x68] sm:$0xff]
    %v37 = vld [vmem:[%s1 + $0x70] sm:$0xff]
    %v38 = vld [vmem:[%s1 + $0x78] sm:$0xff]
    %v39 = vld [vmem:[%s1 + $0x80] sm:$0xff]
    %v40 = vld [vmem:[%s1 + $0x88] sm:$0xff]
    %v41 = vld [vmem:[%s1 + $0x90] sm:$0xff]
    %v42 = vld [vmem:[%s1 + $0x98] sm:$0xff]
    %v43 = vld [vmem:[%s1 + $0xa0] sm:$0xff]
    %v44 = vld [vmem:[%s1 + $0xa8] sm:$0xff]
    %v45 = vld [vmem:[%s1 + $0xb0] sm:$0xff]
    %v46 = vld [vmem:[%s1 + $0xb8] sm:$0xff]
    %v47 = vld [vmem:[%s1 + $0xc0] sm:$0xff]
    %v48 = vld [vmem:[%s1 + $0xc8] sm:$0xff]
    %v49 = vld [vmem:[%s1 + $0xd0] sm:$0xff]
    %v50 = vld [vmem:[%s1 + $0xd8] sm:$0xff]
    %v51 = vld [vmem:[%s1 + $0xe0] sm:$0xff]
    %v52 = vld [vmem:[%s1 + $0xe8] sm:$0xff]
    %v53 = vld [vmem:[%s1 + $0xf0] sm:$0xff]
    %v54 = vld [vmem:[%s1 + $0xf8] sm:$0xff]
    %v55 = vld [vmem:[%s1 + $0x100] sm:$0xff]
    %v56 = vld [vmem:[%s1 + $0x108] sm:$0xff]
    %v57 = vld [vmem:[%s1 + $0x110] sm:$0xff]
    %v58 = vld [vmem:[%s1 + $0x118] sm:$0xff]
    %v59 = vld [vmem:[%s1 + $0x120] sm:$0xff]
    %v60 = vld [vmem:[%s1 + $0x128] sm:$0xff]
    %v61 = vld [vmem:[%s1 + $0x130] sm:$0xff]
    %v62 = vld [vmem:[%s1 + $0x138] sm:$0xff]
    %v63 = vld [vmem:[%s1 + $0x140] sm:$0xff]
    %v64 = vld [vmem:[%s1 + $0x148] sm:$0xff]
    %v65 = vld [vmem:[%s1 + $0x150] sm:$0xff]
    %v66 = vld [vmem:[%s1 + $0x158] sm:$0xff]
    %v67 = vld [vmem:[%s1 + $0x160] sm:$0xff]
    %v68 = vld [vmem:[%s1 + $0x168] sm:$0xff]
    %v69 = vld [vmem:[%s1 + $0x170] sm:$0xff]
    %v70 = vld [vmem:[%s1 + $0x178] sm:$0xff]
    %v71 = vld [vmem:[%s1 + $0x180] sm:$0xff]
    %v72 = vld [vmem:[%s1 + $0x188] sm:$0xff]
    %v73 = vld [vmem:[%s1 + $0x190] sm:$0xff]
    %v74 = vld [vmem:[%s1 + $0x198] sm:$0xff]
    %v75 = vld [vmem:[%s1 + $0x1a0] sm:$0xff]
    %v76 = vld [vmem:[%s1 + $0x1a8] sm:$0xff]
    %v77 = vld [vmem:[%s1 + $0x1b0] sm:$0xff]
    %v78 = vld [vmem:[%s1 + $0x1b8] sm:$0xff]
    %v79 = vld [vmem:[%s1 + $0x1c0] sm:$0xff]
    %v80 = vld [vmem:[%s1 + $0x1c8] sm:$0xff]
    %v81 = vld [vmem:[%s1 + $0x1d0] sm:$0xff]
    %v82 = vld [vmem:[%s1 + $0x1d8] sm:$0xff]
    %v83 = vld [vmem:[%s1 + $0x1e0] sm:$0xff]
    %v84 = vld [vmem:[%s1 + $0x1e8] sm:$0xff]
    %v85 = vld [vmem:[%s1 + $0x1f0] sm:$0xff]
    %v86 = vld [vmem:[%s1 + $0x1f8] sm:$0xff]
    %v87 = vld [vmem:[%s1 + $0x200] sm:$0xff]
    %v88 = vld [vmem:[%s1 + $0x208] sm:$0xff]
    %v89 = vld [vmem:[%s1 + $0x210] sm:$0xff]
    %v90 = vld [vmem:[%s1 + $0x218] sm:$0xff]
    %v91 = vld [vmem:[%s1 + $0x220] sm:$0xff]
    %v92 = vld [vmem:[%s1 + $0x228] sm:$0xff]
    %v93 = vld [vmem:[%s1 + $0x230] sm:$0xff]
    %v94 = vld [vmem:[%s1 + $0x238] sm:$0xff]
    %v95 = vld [vmem:[%s1 + $0x240] sm:$0xff]
    %v96 = vld [vmem:[%s1 + $0x248] sm:$0xff]
    %v97 = vld [vmem:[%s1 + $0x250] sm:$0xff]
    %v98 = vld [vmem:[%s1 + $0x258] sm:$0xff]
    %v99 = vld [vmem:[%s1 + $0x260] sm:$0xff]
    %v100 = vld [vmem:[%s1 + $0x268] sm:$0xff]
    %v101 = vld [vmem:[%s1 + $0x270] sm:$0xff]
    %v102 = vld [vmem:[%s1 + $0x278] sm:$0xff]
    %103 = vmatprep.subr.mxu0 0.0
    %104 = vmatpush1.msra.mxu0 %v38
    %105 = vmatprep.subr.mxu0 0.0
    %106 = vmatpush1.msra.mxu0 %v37
    %107 = vmatprep.subr.mxu0 0.0
    %108 = vmatpush1.msra.mxu0 %v36
    %109 = vmatprep.subr.mxu0 0.0
    %110 = vmatpush1.msra.mxu0 %v35
    %111 = vmatprep.subr.mxu0 0.0
    %112 = vmatpush1.msra.mxu0 %v34
    %113 = vmatprep.subr.mxu0 0.0
    %114 = vmatpush1.msra.mxu0 %v33
    %115 = vmatprep.subr.mxu0 0.0
    %116 = vmatpush1.msra.mxu0 %v32
    %117 = vmatprep.subr.mxu0 0.0
    %118 = vmatpush1.msra.mxu0 %v31
    %119 = vmatprep.subr.mxu0 0.0
    %120 = vmatpush1.msra.mxu0 %v30
    %121 = vmatprep.subr.mxu0 0.0
    %122 = vmatpush1.msra.mxu0 %v29
    %123 = vmatprep.subr.mxu0 0.0
    %124 = vmatpush1.msra.mxu0 %v28
    %125 = vmatprep.subr.mxu0 0.0
    %126 = vmatpush1.msra.mxu0 %v27
    %127 = vmatprep.subr.mxu0 0.0
    %128 = vmatpush1.msra.mxu0 %v26
    %129 = vmatprep.subr.mxu0 0.0
    %130 = vmatpush1.msra.mxu0 %v25
    %131 = vmatprep.subr.mxu0 0.0
    %132 = vmatpush1.msra.mxu0 %v24
    %133 = vmatprep.subr.mxu0 0.0
    %134 = vmatpush1.msra.mxu0 %v23
    %135 = vmatprep.subr.mxu0 0.0
    %136 = vmatpush2.msra.mxu0 %v54
    %137 = vmatprep.subr.mxu0 0.0
    %138 = vmatpush2.msra.mxu0 %v53
    %139 = vmatprep.subr.mxu0 0.0
    %140 = vmatpush2.msra.mxu0 %v52
    %141 = vmatprep.subr.mxu0 0.0
    %142 = vmatpush2.msra.mxu0 %v51
    %143 = vmatprep.subr.mxu0 0.0
    %144 = vmatpush2.msra.mxu0 %v50
    %145 = vmatprep.subr.mxu0 0.0
    %146 = vmatpush2.msra.mxu0 %v49
    %147 = vmatprep.subr.mxu0 0.0
    %148 = vmatpush2.msra.mxu0 %v48
    %149 = vmatprep.subr.mxu0 0.0
    %150 = vmatpush2.msra.mxu0 %v47
    %151 = vmatprep.subr.mxu0 0.0
    %152 = vmatpush2.msra.mxu0 %v46
    %153 = vmatprep.subr.mxu0 0.0
    %154 = vmatpush2.msra.mxu0 %v45
    %155 = vmatprep.subr.mxu0 0.0
    %156 = vmatpush2.msra.mxu0 %v44
    %157 = vmatprep.subr.mxu0 0.0
    %158 = vmatpush2.msra.mxu0 %v43
    %159 = vmatprep.subr.mxu0 0.0
    %160 = vmatpush2.msra.mxu0 %v42
    %161 = vmatprep.subr.mxu0 0.0
    %162 = vmatpush2.msra.mxu0 %v41
    %163 = vmatprep.subr.mxu0 0.0
    %164 = vmatpush2.msra.mxu0 %v40
    %165 = vmatprep.subr.mxu0 0.0
    %166 = vmatpush2.msra.mxu0 %v39
    %167 = vmatprep.mubr.f32.mxu0 %v19
    %168 = vmatmul.mubr.f32.gmra.mxu0 %v18
    %v169 = vpop.f32.mrf.mxu0
    %v170 = vadd.f32 0.0, %v169
    %v171 = vpop.f32.mrf.mxu0
    %172 = vdwg.mxu0
    %173 = vmatprep.subr.mxu0 0.0
    %174 = vmatpush1.msra.mxu0 %v70
    %175 = vmatprep.subr.mxu0 0.0
    %176 = vmatpush1.msra.mxu0 %v69
    %177 = vmatprep.subr.mxu0 0.0
    %178 = vmatpush1.msra.mxu0 %v68
    %179 = vmatprep.subr.mxu0 0.0
    %180 = vmatpush1.msra.mxu0 %v67
    %181 = vmatprep.subr.mxu0 0.0
    %182 = vmatpush1.msra.mxu0 %v66
    %183 = vmatprep.subr.mxu0 0.0
    %184 = vmatpush1.msra.mxu0 %v65
    %185 = vmatprep.subr.mxu0 0.0
    %186 = vmatpush1.msra.mxu0 %v64
    %187 = vmatprep.subr.mxu0 0.0
    %188 = vmatpush1.msra.mxu0 %v63
    %189 = vmatprep.subr.mxu0 0.0
    %190 = vmatpush1.msra.mxu0 %v62
    %191 = vmatprep.subr.mxu0 0.0
    %192 = vmatpush1.msra.mxu0 %v61
    %193 = vmatprep.subr.mxu0 0.0
    %194 = vmatpush1.msra.mxu0 %v60
    %195 = vmatprep.subr.mxu0 0.0
    %196 = vmatpush1.msra.mxu0 %v59
    %197 = vmatprep.subr.mxu0 0.0
    %198 = vmatpush1.msra.mxu0 %v58
    %199 = vmatprep.subr.mxu0 0.0
    %200 = vmatpush1.msra.mxu0 %v57
    %201 = vmatprep.subr.mxu0 0.0
    %202 = vmatpush1.msra.mxu0 %v56
    %203 = vmatprep.subr.mxu0 0.0
    %204 = vmatpush1.msra.mxu0 %v55
    %205 = vmatprep.subr.mxu0 0.0
    %206 = vmatpush2.msra.mxu0 %v86
    %207 = vmatprep.subr.mxu0 0.0
    %208 = vmatpush2.msra.mxu0 %v85
    %209 = vmatprep.subr.mxu0 0.0
    %210 = vmatpush2.msra.mxu0 %v84
    %211 = vmatprep.subr.mxu0 0.0
    %212 = vmatpush2.msra.mxu0 %v83
    %213 = vmatprep.subr.mxu0 0.0
    %214 = vmatpush2.msra.mxu0 %v82
    %215 = vmatprep.subr.mxu0 0.0
    %216 = vmatpush2.msra.mxu0 %v81
    %217 = vmatprep.subr.mxu0 0.0
    %218 = vmatpush2.msra.mxu0 %v80
    %219 = vmatprep.subr.mxu0 0.0
    %220 = vmatpush2.msra.mxu0 %v79
    %221 = vmatprep.subr.mxu0 0.0
    %222 = vmatpush2.msra.mxu0 %v78
    %223 = vmatprep.subr.mxu0 0.0
    %224 = vmatpush2.msra.mxu0 %v77
    %225 = vmatprep.subr.mxu0 0.0
    %226 = vmatpush2.msra.mxu0 %v76
    %227 = vmatprep.subr.mxu0 0.0
    %228 = vmatpush2.msra.mxu0 %v75
    %229 = vmatprep.subr.mxu0 0.0
    %230 = vmatpush2.msra.mxu0 %v74
    %231 = vmatprep.subr.mxu0 0.0
    %232 = vmatpush2.msra.mxu0 %v73
    %233 = vmatprep.subr.mxu0 0.0
    %234 = vmatpush2.msra.mxu0 %v72
    %235 = vmatprep.subr.mxu0 0.0
    %236 = vmatpush2.msra.mxu0 %v71
    %237 = vmatprep.mubr.f32.mxu0 %v21
    %238 = vmatmul.mubr.f32.gmra.mxu0 %v20
    %v239 = vpop.f32.mrf.mxu0
    %v240 = vadd.f32 %v170, %v239
    %v241 = vpop.f32.mrf.mxu0
    %242 = vdwg.mxu0
    %243 = vmatprep.subr.mxu0 0.0
    %244 = vmatpush1.msra.mxu0 %v102
    %245 = vmatprep.subr.mxu0 0.0
    %246 = vmatpush1.msra.mxu0 %v101
    %247 = vmatprep.subr.mxu0 0.0
    %248 = vmatpush1.msra.mxu0 %v100
    %249 = vmatprep.subr.mxu0 0.0
    %250 = vmatpush1.msra.mxu0 %v99
    %251 = vmatprep.subr.mxu0 0.0
    %252 = vmatpush1.msra.mxu0 %v98
    %253 = vmatprep.subr.mxu0 0.0
    %254 = vmatpush1.msra.mxu0 %v97
    %255 = vmatprep.subr.mxu0 0.0
    %256 = vmatpush1.msra.mxu0 %v96
    %257 = vmatprep.subr.mxu0 0.0
    %258 = vmatpush1.msra.mxu0 %v95
    %259 = vmatprep.subr.mxu0 0.0
    %260 = vmatpush1.msra.mxu0 %v94
    %261 = vmatprep.subr.mxu0 0.0
    %262 = vmatpush1.msra.mxu0 %v93
    %263 = vmatprep.subr.mxu0 0.0
    %264 = vmatpush1.msra.mxu0 %v92
    %265 = vmatprep.subr.mxu0 0.0
    %266 = vmatpush1.msra.mxu0 %v91
    %267 = vmatprep.subr.mxu0 0.0
    %268 = vmatpush1.msra.mxu0 %v90
    %269 = vmatprep.subr.mxu0 0.0
    %270 = vmatpush1.msra.mxu0 %v89
    %271 = vmatprep.subr.mxu0 0.0
    %272 = vmatpush1.msra.mxu0 %v88
    %273 = vmatprep.subr.mxu0 0.0
    %274 = vmatpush1.msra.mxu0 %v87
    %275 = vmatprep.subr.mxu0 0.0
    %276 = vmatpush2.msra.mxu0 0.0
    %277 = vmatprep.subr.mxu0 0.0
    %278 = vmatpush2.msra.mxu0 0.0
    %279 = vmatprep.subr.mxu0 0.0
    %280 = vmatpush2.msra.mxu0 0.0
    %281 = vmatprep.subr.mxu0 0.0
    %282 = vmatpush2.msra.mxu0 0.0
    %283 = vmatprep.subr.mxu0 0.0
    %284 = vmatpush2.msra.mxu0 0.0
    %285 = vmatprep.subr.mxu0 0.0
    %286 = vmatpush2.msra.mxu0 0.0
    %287 = vmatprep.subr.mxu0 0.0
    %288 = vmatpush2.msra.mxu0 0.0
    %289 = vmatprep.subr.mxu0 0.0
    %290 = vmatpush2.msra.mxu0 0.0
    %291 = vmatprep.subr.mxu0 0.0
    %292 = vmatpush2.msra.mxu0 0.0
    %293 = vmatprep.subr.mxu0 0.0
    %294 = vmatpush2.msra.mxu0 0.0
    %295 = vmatprep.subr.mxu0 0.0
    %296 = vmatpush2.msra.mxu0 0.0
    %297 = vmatprep.subr.mxu0 0.0
    %298 = vmatpush2.msra.mxu0 0.0
    %299 = vmatprep.subr.mxu0 0.0
    %300 = vmatpush2.msra.mxu0 0.0
    %301 = vmatprep.subr.mxu0 0.0
    %302 = vmatpush2.msra.mxu0 0.0
    %303 = vmatprep.subr.mxu0 0.0
    %304 = vmatpush2.msra.mxu0 0.0
    %305 = vmatprep.subr.mxu0 0.0
    %306 = vmatpush2.msra.mxu0 0.0
    %307 = vmatprep.mubr.f32.mxu0 0.0
    %308 = vmatmul.mubr.f32.gmra.mxu0 %v22
    %v309 = vpop.f32.mrf.mxu0
    %v310 = vadd.f32 %v240, %v309
    %v311 = vpop.f32.mrf.mxu0
    %312 = vdwg.mxu0
    %v313 = vld [vmem:[%s2] sm:$0xff]
    %v314 = vld [vmem:[%s2 + $0x8] sm:$0xff]
    %v315 = vld [vmem:[%s2 + $0x10] sm:$0xff]
    %v316 = vld [vmem:[%s2 + $0x18] sm:$0xff]
    %v317 = vld [vmem:[%s2 + $0x20] sm:$0xff]
    %v318 = vld [vmem:[%s2 + $0x28] sm:$0xff]
    %v319 = vld [vmem:[%s2 + $0x30] sm:$0xff]
    %v320 = vld [vmem:[%s2 + $0x38] sm:$0xff]
    %v321 = vld [vmem:[%s3] sm:$0x1]
    %v323 = vlaneseq
    %v324 = vshrl.u32 %v323, 7
    %v325 = vsub.s32 0, %v324
    %v326 = vrot.slane %v321, %v325
    %vm328 = vcmask 523264
    %v330 = vsel %vm328, %v310, 0
    %332 = vmatprep.subr.mxu0 0.0
    %333 = vmatpush1.msra.mxu0 0.0
    %334 = vmatprep.subr.mxu0 0.0
    %335 = vmatpush1.msra.mxu0 0.0
    %336 = vmatprep.subr.mxu0 0.0
    %337 = vmatpush1.msra.mxu0 0.0
    %338 = vmatprep.subr.mxu0 0.0
    %339 = vmatpush1.msra.mxu0 0.0
    %340 = vmatprep.subr.mxu0 0.0
    %341 = vmatpush1.msra.mxu0 0.0
    %342 = vmatprep.subr.mxu0 0.0
    %343 = vmatpush1.msra.mxu0 0.0
    %344 = vmatprep.subr.mxu0 0.0
    %345 = vmatpush1.msra.mxu0 0.0
    %346 = vmatprep.subr.mxu0 0.0
    %347 = vmatpush1.msra.mxu0 0.0
    %348 = vmatprep.subr.mxu0 0.0
    %349 = vmatpush1.msra.mxu0 %v320
    %350 = vmatprep.subr.mxu0 0.0
    %351 = vmatpush1.msra.mxu0 %v319
    %352 = vmatprep.subr.mxu0 0.0
    %353 = vmatpush1.msra.mxu0 %v318
    %354 = vmatprep.subr.mxu0 0.0
    %355 = vmatpush1.msra.mxu0 %v317
    %356 = vmatprep.subr.mxu0 0.0
    %357 = vmatpush1.msra.mxu0 %v316
    %358 = vmatprep.subr.mxu0 0.0
    %359 = vmatpush1.msra.mxu0 %v315
    %360 = vmatprep.subr.mxu0 0.0
    %361 = vmatpush1.msra.mxu0 %v314
    %362 = vmatprep.subr.mxu0 0.0
    %363 = vmatpush1.msra.mxu0 %v313
    %364 = vmatprep.subr.mxu0 0.0
    %365 = vmatpush2.msra.mxu0 0.0
    %366 = vmatprep.subr.mxu0 0.0
    %367 = vmatpush2.msra.mxu0 0.0
    %368 = vmatprep.subr.mxu0 0.0
    %369 = vmatpush2.msra.mxu0 0.0
    %370 = vmatprep.subr.mxu0 0.0
    %371 = vmatpush2.msra.mxu0 0.0
    %372 = vmatprep.subr.mxu0 0.0
    %373 = vmatpush2.msra.mxu0 0.0
    %374 = vmatprep.subr.mxu0 0.0
    %375 = vmatpush2.msra.mxu0 0.0
    %376 = vmatprep.subr.mxu0 0.0
    %377 = vmatpush2.msra.mxu0 0.0
    %378 = vmatprep.subr.mxu0 0.0
    %379 = vmatpush2.msra.mxu0 0.0
    %380 = vmatprep.subr.mxu0 0.0
    %381 = vmatpush2.msra.mxu0 0.0
    %382 = vmatprep.subr.mxu0 0.0
    %383 = vmatpush2.msra.mxu0 0.0
    %384 = vmatprep.subr.mxu0 0.0
    %385 = vmatpush2.msra.mxu0 0.0
    %386 = vmatprep.subr.mxu0 0.0
    %387 = vmatpush2.msra.mxu0 0.0
    %388 = vmatprep.subr.mxu0 0.0
    %389 = vmatpush2.msra.mxu0 0.0
    %390 = vmatprep.subr.mxu0 0.0
    %391 = vmatpush2.msra.mxu0 0.0
    %392 = vmatprep.subr.mxu0 0.0
    %393 = vmatpush2.msra.mxu0 0.0
    %394 = vmatprep.subr.mxu0 0.0
    %395 = vmatpush2.msra.mxu0 0.0
    %396 = vmatprep.mubr.f32.mxu0 0.0
    %397 = vmatmul.mubr.f32.gmra.mxu0 %v330
    %v398 = vpop.f32.mrf.mxu0
    %v399 = vadd.f32 %v326, %v398
    %v400 = vpop.f32.mrf.mxu0
    %401 = vdwg.mxu0
    %402 = vst [vmem:[#allocation2] sm:$0xff] %v399
    // Predicated region
    $region18: #{tpu_custom_call.1} parent=1 // pred_check
      _
    $region19: #{tpu_custom_call.1} parent=1 // pred_check_branch
      %404 = sbr.rel (0) target = $region21
    $region20: #{tpu_custom_call.1} parent=1 // pred_region
      %s406 = ssub.s32 128, 128
      %407 = vsyncadd [#allocation3], %s406
      %s409 = sshll.u32 [#allocation2], 4
      %s410 = int_to_ptr.vmem [resolvable:$true] %s409
      %412 = dma.vmem_to_hbm [thread:$0]  %s410, 128, %s4, [#allocation3]
    $region21: #{tpu_custom_call.1} parent=1 // pred_fallthru
      _
    // Predicated region
    $region22: #{tpu_custom_call.1} parent=1 // pred_check
      _
    $region23: #{tpu_custom_call.1} parent=1 // pred_check_branch
      %414 = sbr.rel (0) target = $region25
    $region24: #{tpu_custom_call.1} parent=1 // pred_region
      %415 = dma.done [#allocation3], 128
    $region25: #{tpu_custom_call.1} parent=1 // pred_fallthru
      _
    %416 = vsyncpa [#allocation3], 1

</llo_original>
